<compile_context>
chip_gen: v6e
topology: v6e:2x2x1
jax: 0.10.0
libtpu: 0.0.40
codegen_flags: <defaults>
</compile_context>

<pallas_src>
import functools

import jax
import jax.numpy as jnp
from jax import lax
from jax.experimental import pallas as pl
from jax.experimental.pallas import tpu as pltpu


def _focal_kernel(logit_ref, tgt_ref, *rest, smooth, gamma, s_total, ts,
                  has_alpha, needs_mask):
    """Class-major focal-loss tile.

    logit_ref : (C, ts)  probabilities for one batch item, ts pixels on lanes
    tgt_ref   : (1, ts)  int32 class index per pixel
    alpha_ref : (C, 1)   optional per-class alpha weights (only if has_alpha)
    out_ref   : (1, ts)  per-lane partial loss sums (resident across s axis)
    """
    if has_alpha:
        alpha_ref, out_ref = rest
    else:
        (out_ref,) = rest

    sb = pl.program_id(1)

    @pl.when(sb == 0)
    def _():
        out_ref[...] = jnp.zeros_like(out_ref)

    logits = logit_ref[...].astype(jnp.float32)                  # (C, ts)
    tgt = tgt_ref[...]                                           # (1, ts)
    num_class = logits.shape[0]

    # one-hot over the (small, sublane) class axis, lane-dense on the VPU.
    cls = lax.broadcasted_iota(jnp.int32, logits.shape, 0)       # (C, ts)
    onehot = (cls == tgt).astype(jnp.float32)                    # (C, ts)

    if smooth:
        low = smooth / (num_class - 1) if num_class > 1 else smooth
        key = jnp.clip(onehot, low, 1.0 - smooth)
    else:
        key = onehot

    pt = jnp.sum(key * logits, axis=0, keepdims=True) + smooth   # (1, ts)

    if needs_mask:
        col = sb * ts + lax.broadcasted_iota(jnp.int32, (1, ts), 1)
        mask = col < s_total
        # neutral value on padded tail columns: log(1)=0, (1-1)^g=0 -> loss 0
        pt = jnp.where(mask, pt, 1.0)

    logpt = jnp.log(pt)                                          # EUP slot
    one_minus = 1.0 - pt
    if float(gamma) == int(gamma) and gamma >= 0:
        focal = lax.integer_pow(one_minus, int(gamma))           # exact for int gamma
    else:
        focal = jnp.power(one_minus, gamma)

    loss = -1.0 * focal * logpt                                  # (1, ts)

    if has_alpha:
        # alpha[target] gather expressed as a cheap sublane-reduced select.
        alpha_t = jnp.sum(onehot * alpha_ref[...], axis=0, keepdims=True)
        loss = alpha_t * loss

    if needs_mask:
        loss = jnp.where(mask, loss, 0.0)

    out_ref[...] += loss


def _pick_tile(spatial, num_class, itemsize, max_tile):
    """Lane-tile width: as large as fits a conservative VMEM budget."""
    # per-lane bytes: double-buffered logits + target, plus resident f32 output
    bytes_per_lane = (num_class * itemsize + 4) * 2 + 4
    budget = 8 * 1024 * 1024                                     # headroom on v5e/v7x
    ts = min(int(max_tile), budget // bytes_per_lane)
    ts = max(128, (ts // 128) * 128)
    # never larger than the (128-rounded) spatial extent itself
    ts = min(ts, max(128, ((spatial + 127) // 128) * 128))
    return int(ts)


def focal_loss_seg(logit, target, *, alpha=None, gamma=2, balance_index=0,
                   smooth=1e-5, size_average=True, tile=32768):
    """JAX/Pallas equivalent of FocalLoss_seg.forward (apply_nonlin handled by caller)."""
    if smooth is not None and (smooth < 0 or smooth > 1.0):
        raise ValueError("smooth value should be in [0,1]")

    num_class = logit.shape[1]

    # Native class-major view (free reshape, no HBM transpose).
    if logit.ndim > 2:
        n_batch = logit.shape[0]
        logit3 = logit.reshape(n_batch, num_class, -1)           # (N, C, S)
    else:
        n_batch = 1
        logit3 = logit.T.reshape(1, num_class, -1)               # (M, C) fallback
    spatial = logit3.shape[2]

    tgt = target.reshape(n_batch, 1, spatial)                    # (N, 1, S)
    if tgt.dtype != jnp.int32:
        tgt = tgt.astype(jnp.int32)

    # --- alpha construction (matches the PyTorch branches; all host-side) ---
    if alpha is None:
        alpha_arr = None                                         # all-ones -> skip multiply
    elif isinstance(alpha, (list, tuple)) or hasattr(alpha, "__len__"):
        a = jnp.asarray(alpha, jnp.float32).reshape(num_class)
        alpha_arr = (a / a.sum()).reshape(num_class, 1)
    elif isinstance(alpha, float):
        a = jnp.full((num_class,), 1.0 - alpha, jnp.float32)
        a = a.at[balance_index].set(alpha)
        alpha_arr = a.reshape(num_class, 1)
    else:
        raise TypeError("Not support alpha type")

    # Large lane-dense spatial tiles, VMEM-budgeted.
    ts = _pick_tile(spatial, num_class, logit3.dtype.itemsize, tile)
    grid = (n_batch, pl.cdiv(spatial, ts))

    kernel = functools.partial(
        _focal_kernel,
        smooth=float(smooth) if smooth is not None else 0.0,
        gamma=float(gamma),
        s_total=spatial,
        ts=ts,
        has_alpha=alpha_arr is not None,
        needs_mask=(spatial % ts) != 0,
    )

    in_specs = [
        pl.BlockSpec((None, num_class, ts), lambda nb, sb: (nb, 0, sb)),
        pl.BlockSpec((None, 1, ts), lambda nb, sb: (nb, 0, sb)),
    ]
    args = [logit3, tgt]
    if alpha_arr is not None:
        in_specs.append(pl.BlockSpec((num_class, 1), lambda nb, sb: (0, 0)))
        args.append(alpha_arr)

    partials = pl.pallas_call(
        kernel,
        out_shape=jax.ShapeDtypeStruct((n_batch, 1, ts), jnp.float32),
        grid_spec=pltpu.PrefetchScalarGridSpec(
            num_scalar_prefetch=0,
            grid=grid,
            in_specs=in_specs,
            out_specs=pl.BlockSpec((None, 1, ts), lambda nb, sb: (nb, 0, 0)),
        ),
        compiler_params=pltpu.CompilerParams(
            dimension_semantics=("parallel", "arbitrary")),
    )(*args)

    total = jnp.sum(partials)                                    # tiny final reduce
    m = n_batch * spatial
    return total / m if size_average else total


def _reference(logit, target, alpha=None, gamma=2.0, smooth=1e-5):
    """Pure-JAX transcription of the PyTorch forward."""
    n, c = logit.shape[0], logit.shape[1]
    l2 = jnp.transpose(logit.reshape(n, c, -1), (0, 2, 1)).reshape(-1, c)
    t = target.reshape(-1)
    oh = jax.nn.one_hot(t, c, dtype=jnp.float32)
    oh = jnp.clip(oh, smooth / (c - 1), 1.0 - smooth)
    pt = jnp.sum(oh * l2, axis=1) + smooth
    logpt = jnp.log(pt)
    if alpha is None:
        a_t = 1.0
    else:
        a = jnp.asarray(alpha, jnp.float32)
        a = a / a.sum()
        a_t = a[t]
    loss = -1.0 * a_t * (1.0 - pt) ** gamma * logpt
    return loss.mean()


if __name__ == "__main__":
    key = jax.random.PRNGKey(0)
    k1, k2, k3, k4 = jax.random.split(key, 4)
    N, C, H, W = 2, 4, 16, 16

    raw = jax.random.normal(k1, (N, C, H, W), dtype=jnp.float32)
    # apply_nonlin=None in the module: callers supply probabilities themselves.
    probs = jax.nn.softmax(raw, axis=1)
    target = jax.random.randint(k2, (N, 1, H, W), 0, C, dtype=jnp.int32)

    # default (alpha=None) path
    loss = jax.block_until_ready(focal_loss_seg(probs, target))
    ref = _reference(probs, target)
    assert jnp.isfinite(loss), "loss is not finite"
    assert jnp.allclose(loss, ref, rtol=1e-5, atol=1e-6), (loss, ref)

    # list-alpha path
    alpha = [0.1, 0.2, 0.3, 0.4]
    loss_a = jax.block_until_ready(focal_loss_seg(probs, target, alpha=alpha))
    ref_a = _reference(probs, target, alpha=alpha)
    assert jnp.allclose(loss_a, ref_a, rtol=1e-5, atol=1e-6), (loss_a, ref_a)

    # float-alpha path (un-normalized per the PyTorch branch)
    loss_f = jax.block_until_ready(focal_loss_seg(probs, target, alpha=0.25,
                                                  balance_index=1))
    assert jnp.isfinite(loss_f), "float-alpha loss is not finite"

    # non-multiple-of-128 spatial size: exercises the tail-column mask path
    H2, W2 = 9, 13
    raw2 = jax.random.normal(k3, (N, C, H2, W2), dtype=jnp.float32)
    probs2 = jax.nn.softmax(raw2, axis=1)
    target2 = jax.random.randint(k4, (N, 1, H2, W2), 0, C, dtype=jnp.int32)
    loss2 = jax.block_until_ready(focal_loss_seg(probs2, target2))
    ref2 = _reference(probs2, target2)
    assert jnp.allclose(loss2, ref2, rtol=1e-5, atol=1e-6), (loss2, ref2)

    # size_average=False (sum reduction) path
    loss_sum = jax.block_until_ready(
        focal_loss_seg(probs, target, size_average=False))
    assert jnp.allclose(loss_sum, ref * (N * H * W), rtol=1e-5, atol=1e-4)

    print("KERNEL_OK")
</pallas_src>

<mosaic_0001>
module attributes {stable_mosaic.version = 11 : i64} {
  func.func @_focal_kernel(%arg0: i32, %arg1: i32, %arg2: memref<1x4x256xf32, #tpu.memory_space<vmem>>, %arg3: memref<1x1x256xi32, #tpu.memory_space<vmem>>, %arg4: memref<1x1x256xf32, #tpu.memory_space<vmem>>) attributes {dimension_semantics = [#tpu.dimension_semantics<parallel>, #tpu.dimension_semantics<arbitrary>], iteration_bounds = array<i64: 2, 1>, scalar_prefetch = 0 : i64, scratch_operands = 0 : i64, tpu.core_type = #tpu.core_type<tc>, window_params = [{transform_indices = @transform_0, window_bounds = array<i64: 1, 4, 256>}, {transform_indices = @transform_1, window_bounds = array<i64: 1, 1, 256>}, {transform_indices = @transform_2, window_bounds = array<i64: 1, 1, 256>}]} {
    %c0_i32 = arith.constant 0 : i32
    %0 = arith.cmpi eq, %arg1, %c0_i32 : i32
    %1 = arith.extui %0 : i1 to i32
    %c0_i32_0 = arith.constant 0 : i32
    %2 = arith.cmpi ne, %1, %c0_i32_0 : i32
    scf.if %2 {
      %cst_17 = arith.constant 0.000000e+00 : f32
      %34 = vector.broadcast %cst_17 : f32 to vector<1x256xf32>
      %c0_18 = arith.constant 0 : index
      %c0_19 = arith.constant 0 : index
      %c0_20 = arith.constant 0 : index
      %35 = vector.load %arg4[%c0_18, %c0_19, %c0_20] : memref<1x1x256xf32, #tpu.memory_space<vmem>>, vector<1x1x256xf32>
      %36 = vector.shape_cast %35 : vector<1x1x256xf32> to vector<1x256xf32>
      %37 = vector.shape_cast %34 : vector<1x256xf32> to vector<1x1x256xf32>
      tpu.vector_store %arg4[%c0_18, %c0_19, %c0_20], %37 {strides = array<i32>} : memref<1x1x256xf32, #tpu.memory_space<vmem>>, vector<1x1x256xf32>,
    } else {
    }
    %c0 = arith.constant 0 : index
    %c0_1 = arith.constant 0 : index
    %c0_2 = arith.constant 0 : index
    %3 = vector.load %arg2[%c0, %c0_1, %c0_2] : memref<1x4x256xf32, #tpu.memory_space<vmem>>, vector<1x4x256xf32>
    %4 = vector.shape_cast %3 : vector<1x4x256xf32> to vector<4x256xf32>
    %c0_3 = arith.constant 0 : index
    %c0_4 = arith.constant 0 : index
    %c0_5 = arith.constant 0 : index
    %5 = vector.load %arg3[%c0_3, %c0_4, %c0_5] : memref<1x1x256xi32, #tpu.memory_space<vmem>>, vector<1x1x256xi32>
    %6 = vector.shape_cast %5 : vector<1x1x256xi32> to vector<1x256xi32>
    %7 = tpu.iota {dimensions = array<i32: 0>} : vector<4x256xi32>
    %8 = vector.broadcast %6 : vector<1x256xi32> to vector<4x256xi32>
    %9 = arith.cmpi eq, %7, %8 : vector<4x256xi32>
    %10 = arith.extui %9 : vector<4x256xi1> to vector<4x256xi32>
    %11 = arith.sitofp %10 : vector<4x256xi32> to vector<4x256xf32>
    %cst = arith.constant 3.33333332E-6 : f32
    %cst_6 = arith.constant 0.999989986 : f32
    %12 = vector.broadcast %cst : f32 to vector<4x256xf32>
    %13 = arith.maximumf %12, %11 : vector<4x256xf32>
    %14 = vector.broadcast %cst_6 : f32 to vector<4x256xf32>
    %15 = arith.minimumf %14, %13 : vector<4x256xf32>
    %16 = arith.mulf %15, %4 : vector<4x256xf32>
    %cst_7 = arith.constant dense<0.000000e+00> : vector<256xf32>
    %17 = vector.multi_reduction <add>, %16, %cst_7 [0] : vector<4x256xf32> to vector<256xf32>
    %18 = vector.shape_cast %17 : vector<256xf32> to vector<1x256xf32>
    %cst_8 = arith.constant 9.99999974E-6 : f32
    %19 = vector.broadcast %cst_8 : f32 to vector<1x256xf32>
    %20 = arith.addf %18, %19 : vector<1x256xf32>
    %21 = math.log %20 : vector<1x256xf32>
    %cst_9 = arith.constant 1.000000e+00 : f32
    %22 = vector.broadcast %cst_9 : f32 to vector<1x256xf32>
    %23 = arith.subf %22, %20 : vector<1x256xf32>
    %24 = arith.mulf %23, %23 : vector<1x256xf32>
    %cst_10 = arith.constant -1.000000e+00 : f32
    %25 = vector.broadcast %cst_10 : f32 to vector<1x256xf32>
    %26 = arith.mulf %25, %24 : vector<1x256xf32>
    %27 = arith.mulf %26, %21 : vector<1x256xf32>
    %c0_11 = arith.constant 0 : index
    %c0_12 = arith.constant 0 : index
    %c0_13 = arith.constant 0 : index
    %28 = vector.load %arg4[%c0_11, %c0_12, %c0_13] : memref<1x1x256xf32, #tpu.memory_space<vmem>>, vector<1x1x256xf32>
    %29 = vector.shape_cast %28 : vector<1x1x256xf32> to vector<1x256xf32>
    %30 = arith.addf %29, %27 : vector<1x256xf32>
    %c0_14 = arith.constant 0 : index
    %c0_15 = arith.constant 0 : index
    %c0_16 = arith.constant 0 : index
    %31 = vector.load %arg4[%c0_14, %c0_15, %c0_16] : memref<1x1x256xf32, #tpu.memory_space<vmem>>, vector<1x1x256xf32>
    %32 = vector.shape_cast %31 : vector<1x1x256xf32> to vector<1x256xf32>
    %33 = vector.shape_cast %30 : vector<1x256xf32> to vector<1x1x256xf32>
    tpu.vector_store %arg4[%c0_14, %c0_15, %c0_16], %33 {strides = array<i32>} : memref<1x1x256xf32, #tpu.memory_space<vmem>>, vector<1x1x256xf32>,
    return
  }
  func.func @transform_0(%arg0: i32, %arg1: i32) -> (i32, i32, i32) {
    %c0_i32 = arith.constant 0 : i32
    %c0_i32_0 = arith.constant 0 : i32
    return %arg0, %c0_i32, %arg1 : i32, i32, i32
  }
  func.func @transform_1(%arg0: i32, %arg1: i32) -> (i32, i32, i32) {
    %c0_i32 = arith.constant 0 : i32
    %c0_i32_0 = arith.constant 0 : i32
    return %arg0, %c0_i32, %arg1 : i32, i32, i32
  }
  func.func @transform_2(%arg0: i32, %arg1: i32) -> (i32, i32, i32) {
    %c0_i32 = arith.constant 0 : i32
    %c0_i32_0 = arith.constant 0 : i32
    %c0_i32_1 = arith.constant 0 : i32
    return %arg0, %c0_i32, %c0_i32_0 : i32, i32, i32
  }
}

</mosaic_0001>

<llo_original>
// kernel: tpu_custom_call.1
$region0: #{tpu_custom_call.1}
  #allocation0 [shape = 'u32[]', space=smem, size = 0x4, offset = 0x4, fixed_abs, tag = 'smem constant byte address 0x4 - core index']
  #allocation1 [shape = 'u32[144,128]{1,0:T(1,128)}', space=vmem, size = 0x12000, scoped, tag = 'internal scratch']
  %s0 = inlined_call_operand.hbm [shape: f32[2,4,256], index: 0, kind: input, shape index: {}]
  %s1 = inlined_call_operand.hbm [shape: s32[2,1,256], index: 1, kind: input, shape index: {}]
  %s2 = inlined_call_operand.hbm [shape: f32[2,1,256], index: 2, kind: output, shape index: {}]
  %s3 = sld [smem:[#allocation0]]
  $region53: #{tpu_custom_call.1} parent=0
    _
  %s5 = ssub.s32 1, %s3
  %s6 = scalar_select 0, %s5, %s3
  $region1: #{tpu_custom_call.1} parent=0
    #allocation2 [shape = 'u8[8192]{0}', space=vmem, size = 0x2000, scoped, tag = 'input window, operand 0']
    #allocation3 [shape = 's32[2]{0}', space=sflag, size = 0x8, scoped, tag = 'scoped memory for tpu_custom_call.1']
    #allocation4 [shape = 's32[2]{0}', space=sflag, size = 0x8, scoped, tag = 'scoped memory for tpu_custom_call.1']
    #allocation5 [shape = 'u8[2048]{0}', space=vmem, size = 0x800, scoped, tag = 'input window, operand 1']
    #allocation6 [shape = 's32[2]{0}', space=sflag, size = 0x8, scoped, tag = 'scoped memory for tpu_custom_call.1']
    #allocation7 [shape = 'u8[2048]{0}', space=vmem, size = 0x800, scoped, tag = 'output window, operand 0']
    %7 = vsyncpa [#allocation3], 0
    %s8 = scalar_lea.sflag [#allocation3], 1
    %9 = vsyncpa %s8, 0
    %10 = vsyncpa [#allocation6], 0
    %s11 = scalar_lea.sflag [#allocation6], 1
    %12 = vsyncpa %s11, 0
    %13 = vsyncpa [#allocation4], 0
    %s14 = scalar_lea.sflag [#allocation4], 1
    %15 = vsyncpa %s14, 0
    loop: start=0, step=1, limit=4
    $region2: #{tpu_custom_call.1} parent=1 // loop_pre_header
      _
    $region3: #{tpu_custom_call.1} parent=1 // loop_header
      %s17 = sphi 0, %s21
      %p18 = scmp.ge.s32.totalorder %s17, 4
      %s24 = sphi 0, %s36
      %s25 = sphi 0, %s32
      %s26 = sphi 0, %s24
      %s27 = sphi 0, %s25
      %s28 = sphi 0, %s26
      %s29 = sphi 0, %s27
      %s41 = sphi 0, %s43
      %s44 = sphi 0, %s41
      %s45 = sphi 0, %s44
      %s61 = sphi 0, %s45
      %s69 = sphi 0, %s71
      %s72 = sphi 0, %s69
      %s73 = sphi 0, %s72
      %s89 = sphi 0, %s73
      %s95 = sphi 0, %s97
      %s98 = sphi 0, %s95
      %s99 = sphi 0, %s98
      %s115 = sphi 0, %s99
    $region4: #{tpu_custom_call.1} parent=1 // loop_header_branch
      %20 = sbr.rel (%p18) target = $region8
    $region5: #{tpu_custom_call.1} parent=1 // loop_body
      %s22 = ssub.s32 %s17, 1
      %s23 = ssub.s32 %s17, 2
      %s30 = sadd.s32 1, %s25
      %p31 = scmp.ge.s32.totalorder %s30, 1
      %s32 = scalar_select %p31, 0, %s30
      %s33 = sadd.s32 1, %s24
      %s34 = scalar_select %p31, %s33, %s24
      %p35 = scmp.ge.s32.totalorder %s34, 2
      %s36 = scalar_select %p35, 0, %s34
      %s37 = ssub.s32 %s24, %s36
      %s38 = ssub.s32 %s25, %s32
      %s39 = sor.u32 %s37, %s38
      %p40 = scmp.eq.s32.totalorder %s39, 0
      %s42 = sadd.s32 %s41, 1
      %s43 = scalar_select %p40, %s41, %s42
      %p46 = pneg %p40
      %p47 = scmp.eq.s32.totalorder %s17, 1
      %p48 = por %p46, %p47
      %p49 = scmp.ne.s32.totalorder %s41, %s44
      %p50 = scmp.eq.s32.totalorder %s17, 0
      %p51 = por %p49, %p50
      %p52 = scmp.ne.s32.totalorder %s41, %s44
      %p53 = scmp.eq.s32.totalorder %s22, 1
      %p54 = por %p52, %p53
      %p55 = scmp.ne.s32.totalorder %s44, %s45
      %p56 = scmp.eq.s32.totalorder %s22, 0
      %p57 = por %p55, %p56
      %p58 = scmp.ne.s32.totalorder %s44, %s45
      %p59 = scmp.eq.s32.totalorder %s23, 1
      %p60 = por %p58, %p59
      %p62 = scmp.ne.s32.totalorder %s45, %s61
      %p63 = scmp.eq.s32.totalorder %s23, 0
      %p64 = por %p62, %p63
      %s65 = ssub.s32 %s24, %s36
      %s66 = ssub.s32 %s25, %s32
      %s67 = sor.u32 %s65, %s66
      %p68 = scmp.eq.s32.totalorder %s67, 0
      %s70 = sadd.s32 %s69, 1
      %s71 = scalar_select %p68, %s69, %s70
      %p74 = pneg %p68
      %p75 = scmp.eq.s32.totalorder %s17, 1
      %p76 = por %p74, %p75
      %p77 = scmp.ne.s32.totalorder %s69, %s72
      %p78 = scmp.eq.s32.totalorder %s17, 0
      %p79 = por %p77, %p78
      %p80 = scmp.ne.s32.totalorder %s69, %s72
      %p81 = scmp.eq.s32.totalorder %s22, 1
      %p82 = por %p80, %p81
      %p83 = scmp.ne.s32.totalorder %s72, %s73
      %p84 = scmp.eq.s32.totalorder %s22, 0
      %p85 = por %p83, %p84
      %p86 = scmp.ne.s32.totalorder %s72, %s73
      %p87 = scmp.eq.s32.totalorder %s23, 1
      %p88 = por %p86, %p87
      %p90 = scmp.ne.s32.totalorder %s73, %s89
      %p91 = scmp.eq.s32.totalorder %s23, 0
      %p92 = por %p90, %p91
      %s93 = ssub.s32 %s24, %s36
      %p94 = scmp.eq.s32.totalorder %s93, 0
      %s96 = sadd.s32 %s95, 1
      %s97 = scalar_select %p94, %s95, %s96
      %p100 = pneg %p94
      %p101 = scmp.eq.s32.totalorder %s17, 1
      %p102 = por %p100, %p101
      %p103 = scmp.ne.s32.totalorder %s95, %s98
      %p104 = scmp.eq.s32.totalorder %s17, 0
      %p105 = por %p103, %p104
      %p106 = scmp.ne.s32.totalorder %s95, %s98
      %p107 = scmp.eq.s32.totalorder %s22, 1
      %p108 = por %p106, %p107
      %p109 = scmp.ne.s32.totalorder %s98, %s99
      %p110 = scmp.eq.s32.totalorder %s22, 0
      %p111 = por %p109, %p110
      %p112 = scmp.ne.s32.totalorder %s98, %s99
      %p113 = scmp.eq.s32.totalorder %s23, 1
      %p114 = por %p112, %p113
      %p116 = scmp.ne.s32.totalorder %s99, %s115
      %p117 = scmp.eq.s32.totalorder %s23, 0
      %p118 = por %p116, %p117
      %p119 = scmp.le.s32.totalorder 1, %s17
      %p120 = scmp.lt.s32.totalorder %s17, 3
      %p121 = pnand %p119, %p120
      %p122 = pneg %p121
      // Predicated region
      $region9: #{tpu_custom_call.1} parent=5 // pred_check
        _
      $region10: #{tpu_custom_call.1} parent=5 // pred_check_branch
        %124 = sbr.rel (%p121) target = $region12
      $region11: #{tpu_custom_call.1} parent=5 // pred_region
        %s125 = ssub.s32 %s17, 1
      $region12: #{tpu_custom_call.1} parent=5 // pred_fallthru
        _
      %p126 = scmp.lt.s32.totalorder %s17, 2
      // Predicated region
      $region13: #{tpu_custom_call.1} parent=5 // pred_check
        %p127 = pneg %p126
      $region14: #{tpu_custom_call.1} parent=5 // pred_check_branch
        %129 = sbr.rel (%p127) target = $region16
      $region15: #{tpu_custom_call.1} parent=5 // pred_region
        // Predicated region
        $region17: #{tpu_custom_call.1} parent=15 // pred_check
          %p130 = pneg %p51
        $region18: #{tpu_custom_call.1} parent=15 // pred_check_branch
          %132 = sbr.rel (%p130) target = $region20
        $region19: #{tpu_custom_call.1} parent=15 // pred_region
          %s133 = sand.u32 %s41, 1
          %s134 = scalar_lea.sflag [#allocation3], %s133
          %s135 = sand.u32 %s41, 1
          %s136 = smul.addr %s135, 8
          %s137 = scalar_lea.vmem [#allocation2], %s136
          %s138 = smul.u32 2, %s25
          %s140 = ssub.s32 128, 128
          %141 = vsyncadd %s134, %s140
          %s142 = smul.addr %s24, 2
          %s143 = sadd.s32 %s138, %s142
          %s144 = smul.addr %s143, 64
          %s145 = scalar_lea.hbm %s0, %s144
          %s147 = sshll.u32 %s137, 4
          %s148 = int_to_ptr.vmem [resolvable:$true] %s147
          %150 = dma.hbm_to_vmem [thread:$0]  %s145, 128, %s148, %s134
        $region20: #{tpu_custom_call.1} parent=15 // pred_fallthru
          _
        // Predicated region
        $region21: #{tpu_custom_call.1} parent=15 // pred_check
          %p151 = pneg %p79
        $region22: #{tpu_custom_call.1} parent=15 // pred_check_branch
          %153 = sbr.rel (%p151) target = $region24
        $region23: #{tpu_custom_call.1} parent=15 // pred_region
          %s154 = sand.u32 %s69, 1
          %s155 = scalar_lea.sflag [#allocation6], %s154
          %s156 = sand.u32 %s69, 1
          %s157 = smul.addr %s156, 2
          %s158 = scalar_lea.vmem [#allocation5], %s157
          %s159 = smul.u32 2, %s25
          %s161 = ssub.s32 32, 32
          %162 = vsyncadd %s155, %s161
          %s163 = smul.addr %s24, 2
          %s164 = sadd.s32 %s159, %s163
          %s165 = smul.addr %s164, 16
          %s166 = scalar_lea.hbm %s1, %s165
          %s168 = sshll.u32 %s158, 4
          %s169 = int_to_ptr.vmem [resolvable:$true] %s168
          %171 = dma.hbm_to_vmem [thread:$0]  %s166, 32, %s169, %s155
        $region24: #{tpu_custom_call.1} parent=15 // pred_fallthru
          _
      $region16: #{tpu_custom_call.1} parent=5 // pred_fallthru
        _
      %p172 = scmp.le.s32.totalorder 1, %s17
      %p173 = scmp.lt.s32.totalorder %s17, 3
      %p174 = pnand %p172, %p173
      %p175 = pneg %p174
      // Predicated region
      $region25: #{tpu_custom_call.1} parent=5 // pred_check
        _
      $region26: #{tpu_custom_call.1} parent=5 // pred_check_branch
        %177 = sbr.rel (%p174) target = $region28
      $region27: #{tpu_custom_call.1} parent=5 // pred_region
        %s178 = ssub.s32 %s17, 1
        %s179 = sand.u32 %s44, 1
        %s180 = scalar_lea.sflag [#allocation3], %s179
        %s181 = sand.u32 %s44, 1
        %s182 = smul.addr %s181, 8
        %s183 = scalar_lea.vmem [#allocation2], %s182
        // Predicated region
        $region29: #{tpu_custom_call.1} parent=27 // pred_check
          %p184 = pneg %p57
        $region30: #{tpu_custom_call.1} parent=27 // pred_check_branch
          %186 = sbr.rel (%p184) target = $region32
        $region31: #{tpu_custom_call.1} parent=27 // pred_region
          %187 = dma.done %s180, 128
        $region32: #{tpu_custom_call.1} parent=27 // pred_fallthru
          _
        %s188 = sand.u32 %s72, 1
        %s189 = scalar_lea.sflag [#allocation6], %s188
        %s190 = sand.u32 %s72, 1
        %s191 = smul.addr %s190, 2
        %s192 = scalar_lea.vmem [#allocation5], %s191
        // Predicated region
        $region33: #{tpu_custom_call.1} parent=27 // pred_check
          %p193 = pneg %p85
        $region34: #{tpu_custom_call.1} parent=27 // pred_check_branch
          %195 = sbr.rel (%p193) target = $region36
        $region35: #{tpu_custom_call.1} parent=27 // pred_region
          %196 = dma.done %s189, 32
        $region36: #{tpu_custom_call.1} parent=27 // pred_fallthru
          _
        %s197 = sand.u32 %s44, 1
        %s198 = scalar_lea.sflag [#allocation3], %s197
        %s199 = sand.u32 %s44, 1
        %s200 = smul.addr %s199, 8
        %s201 = scalar_lea.vmem [#allocation2], %s200
        %p202 = pneg %p57
        %p203 = pneg %p54
        %s204 = sand.u32 %s72, 1
        %s205 = scalar_lea.sflag [#allocation6], %s204
        %s206 = sand.u32 %s72, 1
        %s207 = smul.addr %s206, 2
        %s208 = scalar_lea.vmem [#allocation5], %s207
        %p209 = pneg %p85
        %p210 = pneg %p82
        %p211 = pneg %p111
        %p212 = pneg %p108
        %s213 = sand.u32 %s98, 1
        %s214 = scalar_lea.sflag [#allocation4], %s213
        %s215 = sand.u32 %s98, 1
        %s216 = smul.addr %s215, 2
        %s217 = scalar_lea.vmem [#allocation7], %s216
        %s218 = smul.u32 2, %s27
        %s219 = smul.u32 2, %s27
        %p220 = scmp.eq.s32.totalorder %s27, 0
        // Predicated region
        $region37: #{tpu_custom_call.1} parent=27 // pred_check
          %p221 = pneg %p220
        $region38: #{tpu_custom_call.1} parent=27 // pred_check_branch
          %223 = sbr.rel (%p221) target = $region40
        $region39: #{tpu_custom_call.1} parent=27 // pred_region
          %v224 = vlaneseq
          %vm225 = vcmp.ge.s32.totalorder %v224, 0
          %vm226 = vcmp.lt.s32.totalorder %v224, 256
          %vm227 = vmand %vm225, %vm226
          %228 = vst.msk [vmem:[%s217] sm:$0x3] %vm227, 0.0
        $region40: #{tpu_custom_call.1} parent=27 // pred_fallthru
          _
        %v229 = vld [vmem:[%s183] sm:$0xff]
        %v230 = vld [vmem:[%s192] sm:$0x3]
        %v231 = vlaneseq
        %v232 = vshrl.u32 %v231, 7
        %v233 = vlaneseq
        %v234 = vshrl.u32 %v233, 7
        %v235 = vsub.s32 0, %v234
        %v236 = vrot.slane %v230, %v235
        %v237 = vlaneseq
        %v238 = vshrl.u32 %v237, 7
        %v239 = vsub.s32 1, %v238
        %v240 = vrot.slane %v230, %v239
        %vm241 = vcmp.eq.s32.totalorder %v232, %v236
        %vm242 = vcmp.eq.s32.totalorder %v232, %v240
        %v243 = vsel %vm241, 1, 0
        %v244 = vsel %vm242, 1, 0
        %v245 = vcvt.s32.f32 %v243
        %v246 = vcvt.s32.f32 %v244
        %v247 = vmax.f32 %v245, 3.3333333e-06
        %v248 = vmax.f32 %v246, 3.3333333e-06
        %v249 = vmin.f32 %v247, 0.99999
        %v250 = vmin.f32 %v248, 0.99999
        %v252 = vcombine.high %v229, %v229
        %v254 = vmul.f32 %v249, %v229
        %v255 = vmul.f32 %v250, %v252
        %vm256 = vcmask 1043456
        %v257 = vsel %vm256, %v254, 0.0
        %v258 = vrot.slane %v257, 4
        %v259 = vadd.f32 %v257, %v258
        %v260 = vrot.slane %v259, 2
        %v261 = vadd.f32 %v259, %v260
        %v262 = vrot.slane %v261, 1
        %v263 = vadd.f32 %v261, %v262
        %v264 = vsel %vm256, %v255, 0.0
        %v265 = vrot.slane %v264, 4
        %v266 = vadd.f32 %v264, %v265
        %v267 = vrot.slane %v266, 2
        %v268 = vadd.f32 %v266, %v267
        %v269 = vrot.slane %v268, 1
        %v270 = vadd.f32 %v268, %v269
        %v271 = vadd.f32 %v263, 1e-05
        %v272 = vadd.f32 %v270, 1e-05
        %v273 = vlog2.pop %v271
        %v274 = vmul.f32 %v273, 0.6931472
        %v275 = vlog2.pop %v272
        %v276 = vmul.f32 %v275, 0.6931472
        %v277 = vsub.f32 1.0, %v271
        %v278 = vsub.f32 1.0, %v272
        %v279 = vmul.f32 %v277, %v277
        %v280 = vmul.f32 %v278, %v278
        %v281 = vmul.f32 %v279, -1.0
        %v282 = vmul.f32 %v280, -1.0
        %v283 = vmul.f32 %v281, %v274
        %v284 = vmul.f32 %v282, %v276
        %v285 = vld [vmem:[%s217] sm:$0x3]
        %v288 = vcombine.low %v283, %v284
        %v290 = vunpack.c.l.s4 1966171168
        %v291 = vunpack.c.0.s8 %v290
        %v292 = vlaneseq
        %v293 = vshrl.u32 %v292, 7
        %v294 = vsub.s32 %v291, %v293
        %v295 = vrot.slane %v288, %v294
        %v297 = vunpack.c.l.s4 1966171168
        %v298 = vunpack.c.0.s8 %v297
        %v299 = vlaneseq
        %v300 = vshrl.u32 %v299, 7
        %v301 = vsub.s32 %v298, %v300
        %v302 = vrot.slane %v295, %v301
        %v304 = vadd.f32 %v285, %v302
        %v305 = vlaneseq
        %vm306 = vcmp.ge.s32.totalorder %v305, 0
        %vm307 = vcmp.lt.s32.totalorder %v305, 256
        %vm308 = vmand %vm306, %vm307
        %309 = vst.msk [vmem:[%s217] sm:$0x3] %vm308, %v304
        %s310 = sand.u32 %s98, 1
        %s311 = scalar_lea.sflag [#allocation4], %s310
        %s312 = sand.u32 %s98, 1
        %s313 = smul.addr %s312, 2
        %s314 = scalar_lea.vmem [#allocation7], %s313
        // Predicated region
        $region41: #{tpu_custom_call.1} parent=27 // pred_check
          %p315 = pneg %p108
        $region42: #{tpu_custom_call.1} parent=27 // pred_check_branch
          %317 = sbr.rel (%p315) target = $region44
        $region43: #{tpu_custom_call.1} parent=27 // pred_region
          %s319 = ssub.s32 32, 32
          %320 = vsyncadd %s311, %s319
          %s321 = smul.addr %s26, 2
          %s322 = smul.addr %s321, 16
          %s323 = scalar_lea.hbm %s2, %s322
          %s325 = sshll.u32 %s314, 4
          %s326 = int_to_ptr.vmem [resolvable:$true] %s325
          %328 = dma.vmem_to_hbm [thread:$0]  %s326, 32, %s323, %s311
        $region44: #{tpu_custom_call.1} parent=27 // pred_fallthru
          _
      $region28: #{tpu_custom_call.1} parent=5 // pred_fallthru
        _
      %p329 = scmp.le.s32.totalorder 2, %s17
      // Predicated region
      $region45: #{tpu_custom_call.1} parent=5 // pred_check
        %p330 = pneg %p329
      $region46: #{tpu_custom_call.1} parent=5 // pred_check_branch
        %332 = sbr.rel (%p330) target = $region48
      $region47: #{tpu_custom_call.1} parent=5 // pred_region
        %s333 = ssub.s32 %s17, 2
        // Predicated region
        $region49: #{tpu_custom_call.1} parent=47 // pred_check
          %p334 = pneg %p114
        $region50: #{tpu_custom_call.1} parent=47 // pred_check_branch
          %336 = sbr.rel (%p334) target = $region52
        $region51: #{tpu_custom_call.1} parent=47 // pred_region
          %s337 = sand.u32 %s99, 1
          %s338 = scalar_lea.sflag [#allocation4], %s337
          %s339 = sand.u32 %s99, 1
          %s340 = smul.addr %s339, 2
          %s341 = scalar_lea.vmem [#allocation7], %s340
          %342 = dma.done %s338, 32
        $region52: #{tpu_custom_call.1} parent=47 // pred_fallthru
          _
      $region48: #{tpu_custom_call.1} parent=5 // pred_fallthru
        _
    $region6: #{tpu_custom_call.1} parent=1 // loop_footer
      %s21 = sadd.s32 1, %s17
    $region7: #{tpu_custom_call.1} parent=1 // loop_footer_branch
      %16 = sbr.rel target = $region3
    $region8: #{tpu_custom_call.1} parent=1 // loop_exit
      _
    %343 = vsyncpa [#allocation3], 1
    %s344 = scalar_lea.sflag [#allocation3], 1
    %345 = vsyncpa %s344, 1
    %346 = vsyncpa [#allocation6], 1
    %s347 = scalar_lea.sflag [#allocation6], 1
    %348 = vsyncpa %s347, 1
    %349 = vsyncpa [#allocation4], 1
    %s350 = scalar_lea.sflag [#allocation4], 1
    %351 = vsyncpa %s350, 1

</llo_original>
